<compile_context>
chip_gen: v7x
topology: tpu7x:2x2x1
jax: 0.10.0
libtpu: 0.0.40
codegen_flags: <defaults>
</compile_context>

<pallas_src>
import math

import jax
import jax.numpy as jnp
from jax.experimental import pallas as pl
from jax.experimental.pallas import tpu as pltpu

# ---- scaled-down hyperparameters (original: samples=500, neuro1=5000, m external)
SAMPLES = 16                 # "samples" in the PyTorch script
M = 7                        # "m" (defined outside the module in the original file)
IN_DIM = SAMPLES * (M + 1)   # 128
NEURO1 = 256                 # scaled-down neuro1
NEURO2 = NEURO1 // 2         # 128, mirrors neuro2 = neuro1/2
NUM_INPUTS = 8               # num_inputs (final output width)
BATCH = 2

# Per-layer (K, N) dims, matching fc1..fc6 of the PyTorch module.
LAYER_DIMS = [
    (IN_DIM, NEURO1),        # fc1 (128, 256)
    (NEURO1, NEURO2),        # fc2 (256, 128)
    (NEURO2, NEURO1),        # fc3 (128, 256)
    (NEURO1, NEURO2),        # fc4 (256, 128)
    (NEURO2, NEURO1),        # fc5 (128, 256)
    (NEURO1, NUM_INPUTS),    # fc6 (256, 8)
]
N_LAYERS = len(LAYER_DIMS)
SLAB_WIDTH = max(n for _, n in LAYER_DIMS)          # 256 lanes, common slab width
# Row offset of each layer's weight block inside the packed slab (multiples of 8).
LAYER_ROW_OFFSETS = []
_off = 0
for _k, _n in LAYER_DIMS:
    LAYER_ROW_OFFSETS.append(_off)
    _off += _k
SLAB_ROWS = _off                                     # 1152
BIAS_ROWS = ((N_LAYERS + 7) // 8) * 8                # pad bias slab to 8 sublanes


def bandnet_fused_kernel(x_ref, w_ref, b_ref, o_ref):
    """x: (B, IN_DIM) bf16; w: (SLAB_ROWS, 256) bf16; b: (8, 256) f32; o: (B, 256) f32."""
    h = x_ref[...]                                   # (B, 128) bf16
    for i, (k_dim, _n_dim) in enumerate(LAYER_DIMS):
        # Drop the zero-padded activation lanes when the next layer's K is narrower
        # (static, lane-aligned slice).
        if h.shape[1] != k_dim:
            h = h[:, :k_dim]
        # Static zero-cost view into the packed weight slab.
        w = w_ref[pl.ds(LAYER_ROW_OFFSETS[i], k_dim), :]   # (k_dim, 256) bf16
        b = b_ref[pl.ds(i, 1), :]                          # (1, 256) f32
        y = jnp.dot(h, w, preferred_element_type=jnp.float32) + b
        if i < N_LAYERS - 1:
            h = jnp.maximum(y, 0.0).astype(jnp.bfloat16)   # ReLU in f32, cast for MXU
        else:
            h = y                                          # final layer: no ReLU, keep f32
    o_ref[...] = h


def bandnet_pallas(x_bf16, w_slab, b_slab):
    """x_bf16: (B, IN_DIM) bf16. Returns (B, NUM_INPUTS) f32."""
    B = x_bf16.shape[0]
    out = pl.pallas_call(
        bandnet_fused_kernel,
        out_shape=jax.ShapeDtypeStruct((B, SLAB_WIDTH), jnp.float32),
        in_specs=[
            pl.BlockSpec(memory_space=pltpu.MemorySpace.VMEM),   # x
            pl.BlockSpec(memory_space=pltpu.MemorySpace.VMEM),   # packed weights
            pl.BlockSpec(memory_space=pltpu.MemorySpace.VMEM),   # packed biases
        ],
        out_specs=pl.BlockSpec(memory_space=pltpu.MemorySpace.VMEM),
    )(x_bf16, w_slab, b_slab)
    # Padded columns 8:256 are exactly zero (zero weight pad + zero bias pad).
    return out[:, :NUM_INPUTS]


def init_linear_params(key, in_features, out_features):
    """Deterministic init matching nn.Linear's U(-1/sqrt(fan_in), 1/sqrt(fan_in))."""
    kw, kb = jax.random.split(key)
    bound = 1.0 / math.sqrt(in_features)
    # PyTorch stores weight as (out, in); we keep (in, out) so the kernel does x @ W.
    w = jax.random.uniform(kw, (in_features, out_features), jnp.float32, -bound, bound)
    b = jax.random.uniform(kb, (out_features,), jnp.float32, -bound, bound)
    return w, b


def make_bandnet_params(key):
    """Build packed slabs once (padding/casting hoisted out of the forward)."""
    keys = jax.random.split(key, N_LAYERS)
    layers = [init_linear_params(k, i, o) for k, (i, o) in zip(keys, LAYER_DIMS)]

    w_blocks, b_rows = [], []
    for (_k_dim, n_dim), (w, b) in zip(LAYER_DIMS, layers):
        w_blocks.append(
            jnp.pad(w.astype(jnp.bfloat16), ((0, 0), (0, SLAB_WIDTH - n_dim)))
        )
        b_rows.append(jnp.pad(b, (0, SLAB_WIDTH - n_dim)))

    w_slab = jnp.concatenate(w_blocks, axis=0)                        # (1152, 256) bf16
    b_slab = jnp.pad(
        jnp.stack(b_rows, axis=0).astype(jnp.float32),
        ((0, BIAS_ROWS - N_LAYERS), (0, 0)),
    )                                                                 # (8, 256) f32

    # Per-layer bf16 params kept only for the plain-JAX reference.
    ref_params = [(w.astype(jnp.bfloat16), b) for (w, b) in layers]
    return w_slab, b_slab, ref_params


@jax.jit
def bandnet_forward(x, w_slab, b_slab):
    # x.view(-1, samples*(m+1)); cast once so the kernel reads bf16 directly.
    x2 = x.reshape(-1, IN_DIM).astype(jnp.bfloat16)
    return bandnet_pallas(x2, w_slab, b_slab)


def bandnet_reference(x, ref_params):
    """Plain-JAX reference using the same bf16 weights / f32 accumulation."""
    h = x.reshape(-1, IN_DIM).astype(jnp.float32)
    for i, (w, b) in enumerate(ref_params):
        y = jnp.dot(
            h.astype(jnp.bfloat16), w, preferred_element_type=jnp.float32
        ) + b.astype(jnp.float32)
        h = jnp.maximum(y, 0.0) if i < len(ref_params) - 1 else y
    return h


if __name__ == "__main__":
    key = jax.random.PRNGKey(0)
    k_x, k_p = jax.random.split(key)

    # Example input shaped like (batch, m+1, samples); the forward flattens it.
    x = jax.random.normal(k_x, (BATCH, M + 1, SAMPLES), jnp.float32)
    w_slab, b_slab, ref_params = make_bandnet_params(k_p)

    out = bandnet_forward(x, w_slab, b_slab)
    out = jax.block_until_ready(out)

    ref = bandnet_reference(x, ref_params)
    assert out.shape == (BATCH, NUM_INPUTS)
    assert jnp.allclose(out, ref, atol=2e-3, rtol=2e-3)

    print("KERNEL_OK")
</pallas_src>

<mosaic_0001>
module attributes {stable_mosaic.version = 11 : i64} {
  func.func @bandnet_fused_kernel(%arg0: memref<2x128xbf16, #tpu.memory_space<vmem>>, %arg1: memref<1152x256xbf16, #tpu.memory_space<vmem>>, %arg2: memref<8x256xf32, #tpu.memory_space<vmem>>, %arg3: memref<2x256xf32, #tpu.memory_space<vmem>>) attributes {dimension_semantics = [], scalar_prefetch = 0 : i64, scratch_operands = 0 : i64, tpu.core_type = #tpu.core_type<tc>} {
    %c0 = arith.constant 0 : index
    %c0_0 = arith.constant 0 : index
    %0 = vector.load %arg0[%c0, %c0_0] : memref<2x128xbf16, #tpu.memory_space<vmem>>, vector<2x128xbf16>
    %c0_1 = arith.constant 0 : index
    %c0_2 = arith.constant 0 : index
    %1 = vector.load %arg1[%c0_1, %c0_2] : memref<1152x256xbf16, #tpu.memory_space<vmem>>, vector<128x256xbf16>
    %c0_3 = arith.constant 0 : index
    %c0_4 = arith.constant 0 : index
    %2 = vector.load %arg2[%c0_3, %c0_4] : memref<8x256xf32, #tpu.memory_space<vmem>>, vector<1x256xf32>
    %cst = arith.constant dense<0.000000e+00> : vector<2x256xf32>
    %3 = tpu.matmul %0, %1, %cst {dimension_numbers = #tpu.dot_dimension_numbers<[1], [0], [0], [1], [0, 0, 1, 1], [], []>} : vector<2x128xbf16>, vector<128x256xbf16>, vector<2x256xf32> -> vector<2x256xf32>
    %4 = vector.broadcast %2 : vector<1x256xf32> to vector<2x256xf32>
    %5 = arith.addf %3, %4 : vector<2x256xf32>
    %cst_5 = arith.constant 0.000000e+00 : f32
    %6 = vector.broadcast %cst_5 : f32 to vector<2x256xf32>
    %7 = arith.maximumf %5, %6 : vector<2x256xf32>
    %8 = arith.truncf %7 : vector<2x256xf32> to vector<2x256xbf16>
    %c128 = arith.constant 128 : index
    %c0_6 = arith.constant 0 : index
    %9 = vector.load %arg1[%c128, %c0_6] : memref<1152x256xbf16, #tpu.memory_space<vmem>>, vector<256x256xbf16>
    %c1 = arith.constant 1 : index
    %c0_7 = arith.constant 0 : index
    %10 = vector.load %arg2[%c1, %c0_7] : memref<8x256xf32, #tpu.memory_space<vmem>>, vector<1x256xf32>
    %cst_8 = arith.constant dense<0.000000e+00> : vector<2x256xf32>
    %11 = tpu.matmul %8, %9, %cst_8 {dimension_numbers = #tpu.dot_dimension_numbers<[1], [0], [0], [1], [0, 0, 1, 1], [], []>} : vector<2x256xbf16>, vector<256x256xbf16>, vector<2x256xf32> -> vector<2x256xf32>
    %12 = vector.broadcast %10 : vector<1x256xf32> to vector<2x256xf32>
    %13 = arith.addf %11, %12 : vector<2x256xf32>
    %cst_9 = arith.constant 0.000000e+00 : f32
    %14 = vector.broadcast %cst_9 : f32 to vector<2x256xf32>
    %15 = arith.maximumf %13, %14 : vector<2x256xf32>
    %16 = arith.truncf %15 : vector<2x256xf32> to vector<2x256xbf16>
    %17 = vector.extract_strided_slice %16 {offsets = [0, 0], sizes = [2, 128], strides = [1, 1]} : vector<2x256xbf16> to vector<2x128xbf16>
    %c384 = arith.constant 384 : index
    %c0_10 = arith.constant 0 : index
    %18 = vector.load %arg1[%c384, %c0_10] : memref<1152x256xbf16, #tpu.memory_space<vmem>>, vector<128x256xbf16>
    %c2 = arith.constant 2 : index
    %c0_11 = arith.constant 0 : index
    %19 = vector.load %arg2[%c2, %c0_11] : memref<8x256xf32, #tpu.memory_space<vmem>>, vector<1x256xf32>
    %cst_12 = arith.constant dense<0.000000e+00> : vector<2x256xf32>
    %20 = tpu.matmul %17, %18, %cst_12 {dimension_numbers = #tpu.dot_dimension_numbers<[1], [0], [0], [1], [0, 0, 1, 1], [], []>} : vector<2x128xbf16>, vector<128x256xbf16>, vector<2x256xf32> -> vector<2x256xf32>
    %21 = vector.broadcast %19 : vector<1x256xf32> to vector<2x256xf32>
    %22 = arith.addf %20, %21 : vector<2x256xf32>
    %cst_13 = arith.constant 0.000000e+00 : f32
    %23 = vector.broadcast %cst_13 : f32 to vector<2x256xf32>
    %24 = arith.maximumf %22, %23 : vector<2x256xf32>
    %25 = arith.truncf %24 : vector<2x256xf32> to vector<2x256xbf16>
    %c512 = arith.constant 512 : index
    %c0_14 = arith.constant 0 : index
    %26 = vector.load %arg1[%c512, %c0_14] : memref<1152x256xbf16, #tpu.memory_space<vmem>>, vector<256x256xbf16>
    %c3 = arith.constant 3 : index
    %c0_15 = arith.constant 0 : index
    %27 = vector.load %arg2[%c3, %c0_15] : memref<8x256xf32, #tpu.memory_space<vmem>>, vector<1x256xf32>
    %cst_16 = arith.constant dense<0.000000e+00> : vector<2x256xf32>
    %28 = tpu.matmul %25, %26, %cst_16 {dimension_numbers = #tpu.dot_dimension_numbers<[1], [0], [0], [1], [0, 0, 1, 1], [], []>} : vector<2x256xbf16>, vector<256x256xbf16>, vector<2x256xf32> -> vector<2x256xf32>
    %29 = vector.broadcast %27 : vector<1x256xf32> to vector<2x256xf32>
    %30 = arith.addf %28, %29 : vector<2x256xf32>
    %cst_17 = arith.constant 0.000000e+00 : f32
    %31 = vector.broadcast %cst_17 : f32 to vector<2x256xf32>
    %32 = arith.maximumf %30, %31 : vector<2x256xf32>
    %33 = arith.truncf %32 : vector<2x256xf32> to vector<2x256xbf16>
    %34 = vector.extract_strided_slice %33 {offsets = [0, 0], sizes = [2, 128], strides = [1, 1]} : vector<2x256xbf16> to vector<2x128xbf16>
    %c768 = arith.constant 768 : index
    %c0_18 = arith.constant 0 : index
    %35 = vector.load %arg1[%c768, %c0_18] : memref<1152x256xbf16, #tpu.memory_space<vmem>>, vector<128x256xbf16>
    %c4 = arith.constant 4 : index
    %c0_19 = arith.constant 0 : index
    %36 = vector.load %arg2[%c4, %c0_19] : memref<8x256xf32, #tpu.memory_space<vmem>>, vector<1x256xf32>
    %cst_20 = arith.constant dense<0.000000e+00> : vector<2x256xf32>
    %37 = tpu.matmul %34, %35, %cst_20 {dimension_numbers = #tpu.dot_dimension_numbers<[1], [0], [0], [1], [0, 0, 1, 1], [], []>} : vector<2x128xbf16>, vector<128x256xbf16>, vector<2x256xf32> -> vector<2x256xf32>
    %38 = vector.broadcast %36 : vector<1x256xf32> to vector<2x256xf32>
    %39 = arith.addf %37, %38 : vector<2x256xf32>
    %cst_21 = arith.constant 0.000000e+00 : f32
    %40 = vector.broadcast %cst_21 : f32 to vector<2x256xf32>
    %41 = arith.maximumf %39, %40 : vector<2x256xf32>
    %42 = arith.truncf %41 : vector<2x256xf32> to vector<2x256xbf16>
    %c896 = arith.constant 896 : index
    %c0_22 = arith.constant 0 : index
    %43 = vector.load %arg1[%c896, %c0_22] : memref<1152x256xbf16, #tpu.memory_space<vmem>>, vector<256x256xbf16>
    %c5 = arith.constant 5 : index
    %c0_23 = arith.constant 0 : index
    %44 = vector.load %arg2[%c5, %c0_23] : memref<8x256xf32, #tpu.memory_space<vmem>>, vector<1x256xf32>
    %cst_24 = arith.constant dense<0.000000e+00> : vector<2x256xf32>
    %45 = tpu.matmul %42, %43, %cst_24 {dimension_numbers = #tpu.dot_dimension_numbers<[1], [0], [0], [1], [0, 0, 1, 1], [], []>} : vector<2x256xbf16>, vector<256x256xbf16>, vector<2x256xf32> -> vector<2x256xf32>
    %46 = vector.broadcast %44 : vector<1x256xf32> to vector<2x256xf32>
    %47 = arith.addf %45, %46 : vector<2x256xf32>
    %c0_25 = arith.constant 0 : index
    %c0_26 = arith.constant 0 : index
    %48 = vector.load %arg3[%c0_25, %c0_26] : memref<2x256xf32, #tpu.memory_space<vmem>>, vector<2x256xf32>
    tpu.vector_store %arg3[%c0_25, %c0_26], %47 {strides = array<i32>} : memref<2x256xf32, #tpu.memory_space<vmem>>, vector<2x256xf32>,
    return
  }
}

</mosaic_0001>

<llo_original>
// kernel: bandnet_forward.1
$region0: #{bandnet_forward.1}
  #allocation0 [shape = 'u32[]', space=smem, size = 0x4, offset = 0x4, fixed_abs, tag = 'smem constant byte address 0x4 - core index']
  #allocation1 [shape = 'u32[144,128]{1,0:T(1,128)}', space=vmem, size = 0x12000, scoped, tag = 'internal scratch']
  %s0 = inlined_call_operand.vmem [shape: bf16[2,128], index: 0, kind: input, shape index: {}]
  %s1 = inlined_call_operand.hbm [shape: bf16[1152,256], index: 1, kind: input, shape index: {}]
  %s2 = inlined_call_operand.vmem [shape: f32[8,256], index: 2, kind: input, shape index: {}]
  %s3 = inlined_call_operand.vmem [shape: f32[2,256], index: 3, kind: output, shape index: {}]
  %s4 = sld [smem:[#allocation0]]
  $region26: #{bandnet_forward.1} parent=0
    _
  %s6 = ssub.s32 1, %s4
  %s7 = scalar_select 0, %s6, %s4
  $region1: #{bandnet_forward.1} parent=0
    #allocation2 [shape = 'u8[589824]{0}', space=vmem, size = 0x90000, scoped, tag = 'input window, operand 1, single buffered']
    #allocation3 [shape = 's32[1]{0}', space=sflag, size = 0x4, scoped, tag = 'scoped memory for bandnet_forward.1']
    %8 = vsyncpa [#allocation3], 0
    // Predicated region
    $region2: #{bandnet_forward.1} parent=1 // pred_check
      _
    $region3: #{bandnet_forward.1} parent=1 // pred_check_branch
      %10 = sbr.rel (0) target = $region5
    $region4: #{bandnet_forward.1} parent=1 // pred_region
      _
    $region5: #{bandnet_forward.1} parent=1 // pred_fallthru
      _
    // Predicated region
    $region6: #{bandnet_forward.1} parent=1 // pred_check
      _
    $region7: #{bandnet_forward.1} parent=1 // pred_check_branch
      %12 = sbr.rel (0) target = $region9
    $region8: #{bandnet_forward.1} parent=1 // pred_region
      %s14 = ssub.s32 18432, 18432
      %15 = vsyncadd [#allocation3], %s14
      %s16 = sshll.u32 [#allocation2], 4
      %s17 = int_to_ptr.vmem [resolvable:$true] %s16
      %22 = dma.hbm_to_vmem [thread:$0]  %s1, 18432, %s17, [#allocation3], 128, 128, 8
    $region9: #{bandnet_forward.1} parent=1 // pred_fallthru
      _
    // Predicated region
    $region10: #{bandnet_forward.1} parent=1 // pred_check
      _
    $region11: #{bandnet_forward.1} parent=1 // pred_check_branch
      %24 = sbr.rel (0) target = $region13
    $region12: #{bandnet_forward.1} parent=1 // pred_region
      _
    $region13: #{bandnet_forward.1} parent=1 // pred_fallthru
      _
    // Predicated region
    $region14: #{bandnet_forward.1} parent=1 // pred_check
      _
    $region15: #{bandnet_forward.1} parent=1 // pred_check_branch
      %26 = sbr.rel (0) target = $region17
    $region16: #{bandnet_forward.1} parent=1 // pred_region
      %27 = dma.done [#allocation3], 18432
    $region17: #{bandnet_forward.1} parent=1 // pred_fallthru
      _
    %v29 = vld [vmem:[%s0] sm:$0x1]
    %v30 = vld [vmem:[#allocation2] sm:$0xff]
    %v31 = vld [vmem:[#allocation2 + $0x8] sm:$0xff]
    %v32 = vld [vmem:[#allocation2 + $0x10] sm:$0xff]
    %v33 = vld [vmem:[#allocation2 + $0x18] sm:$0xff]
    %v34 = vld [vmem:[#allocation2 + $0x20] sm:$0xff]
    %v35 = vld [vmem:[#allocation2 + $0x28] sm:$0xff]
    %v36 = vld [vmem:[#allocation2 + $0x30] sm:$0xff]
    %v37 = vld [vmem:[#allocation2 + $0x38] sm:$0xff]
    %v38 = vld [vmem:[#allocation2 + $0x40] sm:$0xff]
    %v39 = vld [vmem:[#allocation2 + $0x48] sm:$0xff]
    %v40 = vld [vmem:[#allocation2 + $0x50] sm:$0xff]
    %v41 = vld [vmem:[#allocation2 + $0x58] sm:$0xff]
    %v42 = vld [vmem:[#allocation2 + $0x60] sm:$0xff]
    %v43 = vld [vmem:[#allocation2 + $0x68] sm:$0xff]
    %v44 = vld [vmem:[#allocation2 + $0x70] sm:$0xff]
    %v45 = vld [vmem:[#allocation2 + $0x78] sm:$0xff]
    %v46 = vld [vmem:[%s2] ss:$8 sm:$0x3]
    %v48 = vlaneseq
    %v49 = vshrl.u32 %v48, 7
    %v50 = vsub.s32 0, %v49
    %v51 = vrot.slane %v46, %v50
    %v52 = vlaneseq
    %v53 = vshrl.u32 %v52, 7
    %v54 = vsub.s32 1, %v53
    %v55 = vrot.slane %v46, %v54
    %v74 = vunpack.c.l.b16 %v30
    %v75 = vunpack.c.h.b16 %v30
    %v76 = vunpack.c.l.b16 %v31
    %v77 = vunpack.c.h.b16 %v31
    %v78 = vunpack.c.l.b16 %v32
    %v79 = vunpack.c.h.b16 %v32
    %v80 = vunpack.c.l.b16 %v33
    %v81 = vunpack.c.h.b16 %v33
    %v82 = vunpack.c.l.b16 %v34
    %v83 = vunpack.c.h.b16 %v34
    %v84 = vunpack.c.l.b16 %v35
    %v85 = vunpack.c.h.b16 %v35
    %v86 = vunpack.c.l.b16 %v36
    %v87 = vunpack.c.h.b16 %v36
    %v88 = vunpack.c.l.b16 %v37
    %v89 = vunpack.c.h.b16 %v37
    %v90 = vunpack.c.l.b16 %v38
    %v91 = vunpack.c.h.b16 %v38
    %v92 = vunpack.c.l.b16 %v39
    %v93 = vunpack.c.h.b16 %v39
    %v94 = vunpack.c.l.b16 %v40
    %v95 = vunpack.c.h.b16 %v40
    %v96 = vunpack.c.l.b16 %v41
    %v97 = vunpack.c.h.b16 %v41
    %v98 = vunpack.c.l.b16 %v42
    %v99 = vunpack.c.h.b16 %v42
    %v100 = vunpack.c.l.b16 %v43
    %v101 = vunpack.c.h.b16 %v43
    %v102 = vunpack.c.l.b16 %v44
    %v103 = vunpack.c.h.b16 %v44
    %v104 = vunpack.c.l.b16 %v45
    %v105 = vunpack.c.h.b16 %v45
    %v106 = vpack.c.b16 %v76, %v74
    %v107 = vpack.c.b16 %v77, %v75
    %v108 = vpack.c.b16 %v80, %v78
    %v109 = vpack.c.b16 %v81, %v79
    %v110 = vpack.c.b16 %v84, %v82
    %v111 = vpack.c.b16 %v85, %v83
    %v112 = vpack.c.b16 %v88, %v86
    %v113 = vpack.c.b16 %v89, %v87
    %v114 = vpack.c.b16 %v92, %v90
    %v115 = vpack.c.b16 %v93, %v91
    %v116 = vpack.c.b16 %v96, %v94
    %v117 = vpack.c.b16 %v97, %v95
    %v118 = vpack.c.b16 %v100, %v98
    %v119 = vpack.c.b16 %v101, %v99
    %v120 = vpack.c.b16 %v104, %v102
    %v121 = vpack.c.b16 %v105, %v103
    %138 = vmatprep.subr.bf16.mxu0 %v107
    %139 = vmatpush1.bf16.msra.mxu0 %v106
    %140 = vmatprep.subr.bf16.mxu0 %v109
    %141 = vmatpush1.bf16.msra.mxu0 %v108
    %142 = vmatprep.subr.bf16.mxu0 %v111
    %143 = vmatpush1.bf16.msra.mxu0 %v110
    %144 = vmatprep.subr.bf16.mxu0 %v113
    %145 = vmatpush1.bf16.msra.mxu0 %v112
    %146 = vmatprep.subr.bf16.mxu0 %v115
    %147 = vmatpush1.bf16.msra.mxu0 %v114
    %148 = vmatprep.subr.bf16.mxu0 %v117
    %149 = vmatpush1.bf16.msra.mxu0 %v116
    %150 = vmatprep.subr.bf16.mxu0 %v119
    %151 = vmatpush1.bf16.msra.mxu0 %v118
    %152 = vmatprep.subr.bf16.mxu0 %v121
    %153 = vmatpush1.bf16.msra.mxu0 %v120
    %154 = vmatprep.subr.bf16.mxu0 0
    %155 = vmatpush1.bf16.msra.mxu0 0
    %156 = vmatprep.subr.bf16.mxu0 0
    %157 = vmatpush1.bf16.msra.mxu0 0
    %158 = vmatprep.subr.bf16.mxu0 0
    %159 = vmatpush1.bf16.msra.mxu0 0
    %160 = vmatprep.subr.bf16.mxu0 0
    %161 = vmatpush1.bf16.msra.mxu0 0
    %162 = vmatprep.subr.bf16.mxu0 0
    %163 = vmatpush1.bf16.msra.mxu0 0
    %164 = vmatprep.subr.bf16.mxu0 0
    %165 = vmatpush1.bf16.msra.mxu0 0
    %166 = vmatprep.subr.bf16.mxu0 0
    %167 = vmatpush1.bf16.msra.mxu0 0
    %168 = vmatprep.subr.bf16.mxu0 0
    %169 = vmatpush1.bf16.msra.mxu0 0
    %170 = vmatprep.mubr.bf16.mxu0 0
    %171 = vmatmul.mubr.bf16.gmra.mrb[0].mxu0 %v29
    %v172 = vpop.f32.mrb[0].mxu0
    %v173 = vadd.f32 %v51, %v172
    %v174 = vpop.f32.mrb[0].mxu0
    %v175 = vadd.f32 %v55, %v174
    %v176 = vpop.f32.mrb[0].mxu0
    %v177 = vpop.f32.mrb[0].mxu0
    %178 = vdwg.mxu0
    %v179 = vmax.f32 %v173, 0.0
    %v180 = vmax.f32 %v175, 0.0
    %v181 = vpack.c.bf16 %v179, %v179
    %v182 = vpack.c.bf16 %v180, %v180
    %v183 = vld [vmem:[#allocation2 + $0x80] sm:$0xff]
    %v184 = vld [vmem:[#allocation2 + $0x88] sm:$0xff]
    %v185 = vld [vmem:[#allocation2 + $0x90] sm:$0xff]
    %v186 = vld [vmem:[#allocation2 + $0x98] sm:$0xff]
    %v187 = vld [vmem:[#allocation2 + $0xa0] sm:$0xff]
    %v188 = vld [vmem:[#allocation2 + $0xa8] sm:$0xff]
    %v189 = vld [vmem:[#allocation2 + $0xb0] sm:$0xff]
    %v190 = vld [vmem:[#allocation2 + $0xb8] sm:$0xff]
    %v191 = vld [vmem:[#allocation2 + $0xc0] sm:$0xff]
    %v192 = vld [vmem:[#allocation2 + $0xc8] sm:$0xff]
    %v193 = vld [vmem:[#allocation2 + $0xd0] sm:$0xff]
    %v194 = vld [vmem:[#allocation2 + $0xd8] sm:$0xff]
    %v195 = vld [vmem:[#allocation2 + $0xe0] sm:$0xff]
    %v196 = vld [vmem:[#allocation2 + $0xe8] sm:$0xff]
    %v197 = vld [vmem:[#allocation2 + $0xf0] sm:$0xff]
    %v198 = vld [vmem:[#allocation2 + $0xf8] sm:$0xff]
    %v199 = vld [vmem:[#allocation2 + $0x100] sm:$0xff]
    %v200 = vld [vmem:[#allocation2 + $0x108] sm:$0xff]
    %v201 = vld [vmem:[#allocation2 + $0x110] sm:$0xff]
    %v202 = vld [vmem:[#allocation2 + $0x118] sm:$0xff]
    %v203 = vld [vmem:[#allocation2 + $0x120] sm:$0xff]
    %v204 = vld [vmem:[#allocation2 + $0x128] sm:$0xff]
    %v205 = vld [vmem:[#allocation2 + $0x130] sm:$0xff]
    %v206 = vld [vmem:[#allocation2 + $0x138] sm:$0xff]
    %v207 = vld [vmem:[#allocation2 + $0x140] sm:$0xff]
    %v208 = vld [vmem:[#allocation2 + $0x148] sm:$0xff]
    %v209 = vld [vmem:[#allocation2 + $0x150] sm:$0xff]
    %v210 = vld [vmem:[#allocation2 + $0x158] sm:$0xff]
    %v211 = vld [vmem:[#allocation2 + $0x160] sm:$0xff]
    %v212 = vld [vmem:[#allocation2 + $0x168] sm:$0xff]
    %v213 = vld [vmem:[#allocation2 + $0x170] sm:$0xff]
    %v214 = vld [vmem:[#allocation2 + $0x178] sm:$0xff]
    %s215 = scalar_lea.vmem %s2, 1
    %v216 = vld [vmem:[%s215] ss:$8 sm:$0x3]
    %v218 = vlaneseq
    %v219 = vshrl.u32 %v218, 7
    %v220 = vsub.s32 0, %v219
    %v221 = vrot.slane %v216, %v220
    %v255 = vunpack.c.l.b16 %v183
    %v256 = vunpack.c.h.b16 %v183
    %v257 = vunpack.c.l.b16 %v184
    %v258 = vunpack.c.h.b16 %v184
    %v259 = vunpack.c.l.b16 %v185
    %v260 = vunpack.c.h.b16 %v185
    %v261 = vunpack.c.l.b16 %v186
    %v262 = vunpack.c.h.b16 %v186
    %v263 = vunpack.c.l.b16 %v187
    %v264 = vunpack.c.h.b16 %v187
    %v265 = vunpack.c.l.b16 %v188
    %v266 = vunpack.c.h.b16 %v188
    %v267 = vunpack.c.l.b16 %v189
    %v268 = vunpack.c.h.b16 %v189
    %v269 = vunpack.c.l.b16 %v190
    %v270 = vunpack.c.h.b16 %v190
    %v271 = vunpack.c.l.b16 %v191
    %v272 = vunpack.c.h.b16 %v191
    %v273 = vunpack.c.l.b16 %v192
    %v274 = vunpack.c.h.b16 %v192
    %v275 = vunpack.c.l.b16 %v193
    %v276 = vunpack.c.h.b16 %v193
    %v277 = vunpack.c.l.b16 %v194
    %v278 = vunpack.c.h.b16 %v194
    %v279 = vunpack.c.l.b16 %v195
    %v280 = vunpack.c.h.b16 %v195
    %v281 = vunpack.c.l.b16 %v196
    %v282 = vunpack.c.h.b16 %v196
    %v283 = vunpack.c.l.b16 %v197
    %v284 = vunpack.c.h.b16 %v197
    %v285 = vunpack.c.l.b16 %v198
    %v286 = vunpack.c.h.b16 %v198
    %v287 = vunpack.c.l.b16 %v199
    %v288 = vunpack.c.h.b16 %v199
    %v289 = vunpack.c.l.b16 %v200
    %v290 = vunpack.c.h.b16 %v200
    %v291 = vunpack.c.l.b16 %v201
    %v292 = vunpack.c.h.b16 %v201
    %v293 = vunpack.c.l.b16 %v202
    %v294 = vunpack.c.h.b16 %v202
    %v295 = vunpack.c.l.b16 %v203
    %v296 = vunpack.c.h.b16 %v203
    %v297 = vunpack.c.l.b16 %v204
    %v298 = vunpack.c.h.b16 %v204
    %v299 = vunpack.c.l.b16 %v205
    %v300 = vunpack.c.h.b16 %v205
    %v301 = vunpack.c.l.b16 %v206
    %v302 = vunpack.c.h.b16 %v206
    %v303 = vunpack.c.l.b16 %v207
    %v304 = vunpack.c.h.b16 %v207
    %v305 = vunpack.c.l.b16 %v208
    %v306 = vunpack.c.h.b16 %v208
    %v307 = vunpack.c.l.b16 %v209
    %v308 = vunpack.c.h.b16 %v209
    %v309 = vunpack.c.l.b16 %v210
    %v310 = vunpack.c.h.b16 %v210
    %v311 = vunpack.c.l.b16 %v211
    %v312 = vunpack.c.h.b16 %v211
    %v313 = vunpack.c.l.b16 %v212
    %v314 = vunpack.c.h.b16 %v212
    %v315 = vunpack.c.l.b16 %v213
    %v316 = vunpack.c.h.b16 %v213
    %v317 = vunpack.c.l.b16 %v214
    %v318 = vunpack.c.h.b16 %v214
    %v319 = vpack.c.b16 %v257, %v255
    %v320 = vpack.c.b16 %v258, %v256
    %v321 = vpack.c.b16 %v261, %v259
    %v322 = vpack.c.b16 %v262, %v260
    %v323 = vpack.c.b16 %v265, %v263
    %v324 = vpack.c.b16 %v266, %v264
    %v325 = vpack.c.b16 %v269, %v267
    %v326 = vpack.c.b16 %v270, %v268
    %v327 = vpack.c.b16 %v273, %v271
    %v328 = vpack.c.b16 %v274, %v272
    %v329 = vpack.c.b16 %v277, %v275
    %v330 = vpack.c.b16 %v278, %v276
    %v331 = vpack.c.b16 %v281, %v279
    %v332 = vpack.c.b16 %v282, %v280
    %v333 = vpack.c.b16 %v285, %v283
    %v334 = vpack.c.b16 %v286, %v284
    %v335 = vpack.c.b16 %v289, %v287
    %v336 = vpack.c.b16 %v290, %v288
    %v337 = vpack.c.b16 %v293, %v291
    %v338 = vpack.c.b16 %v294, %v292
    %v339 = vpack.c.b16 %v297, %v295
    %v340 = vpack.c.b16 %v298, %v296
    %v341 = vpack.c.b16 %v301, %v299
    %v342 = vpack.c.b16 %v302, %v300
    %v343 = vpack.c.b16 %v305, %v303
    %v344 = vpack.c.b16 %v306, %v304
    %v345 = vpack.c.b16 %v309, %v307
    %v346 = vpack.c.b16 %v310, %v308
    %v347 = vpack.c.b16 %v313, %v311
    %v348 = vpack.c.b16 %v314, %v312
    %v349 = vpack.c.b16 %v317, %v315
    %v350 = vpack.c.b16 %v318, %v316
    %383 = vmatprep.subr.bf16.mxu0 %v320
    %384 = vmatpush1.bf16.msra.mxu0 %v319
    %385 = vmatprep.subr.bf16.mxu0 %v322
    %386 = vmatpush1.bf16.msra.mxu0 %v321
    %387 = vmatprep.subr.bf16.mxu0 %v324
    %388 = vmatpush1.bf16.msra.mxu0 %v323
    %389 = vmatprep.subr.bf16.mxu0 %v326
    %390 = vmatpush1.bf16.msra.mxu0 %v325
    %391 = vmatprep.subr.bf16.mxu0 %v328
    %392 = vmatpush1.bf16.msra.mxu0 %v327
    %393 = vmatprep.subr.bf16.mxu0 %v330
    %394 = vmatpush1.bf16.msra.mxu0 %v329
    %395 = vmatprep.subr.bf16.mxu0 %v332
    %396 = vmatpush1.bf16.msra.mxu0 %v331
    %397 = vmatprep.subr.bf16.mxu0 %v334
    %398 = vmatpush1.bf16.msra.mxu0 %v333
    %399 = vmatprep.subr.bf16.mxu0 %v336
    %400 = vmatpush1.bf16.msra.mxu0 %v335
    %401 = vmatprep.subr.bf16.mxu0 %v338
    %402 = vmatpush1.bf16.msra.mxu0 %v337
    %403 = vmatprep.subr.bf16.mxu0 %v340
    %404 = vmatpush1.bf16.msra.mxu0 %v339
    %405 = vmatprep.subr.bf16.mxu0 %v342
    %406 = vmatpush1.bf16.msra.mxu0 %v341
    %407 = vmatprep.subr.bf16.mxu0 %v344
    %408 = vmatpush1.bf16.msra.mxu0 %v343
    %409 = vmatprep.subr.bf16.mxu0 %v346
    %410 = vmatpush1.bf16.msra.mxu0 %v345
    %411 = vmatprep.subr.bf16.mxu0 %v348
    %412 = vmatpush1.bf16.msra.mxu0 %v347
    %413 = vmatprep.subr.bf16.mxu0 %v350
    %414 = vmatpush1.bf16.msra.mxu0 %v349
    %415 = vmatprep.mubr.bf16.mxu0 %v182
    %416 = vmatmul.mubr.bf16.gmra.mrb[0].mxu0 %v181
    %v417 = vpop.f32.mrb[0].mxu0
    %v418 = vadd.f32 %v221, %v417
    %v419 = vpop.f32.mrb[0].mxu0
    %v420 = vpop.f32.mrb[0].mxu0
    %v421 = vpop.f32.mrb[0].mxu0
    %422 = vdwg.mxu0
    %v423 = vmax.f32 %v418, 0.0
    %v424 = vpack.c.bf16 %v423, %v423
    %v425 = vld [vmem:[#allocation2 + $0x180] sm:$0xff]
    %v426 = vld [vmem:[#allocation2 + $0x188] sm:$0xff]
    %v427 = vld [vmem:[#allocation2 + $0x190] sm:$0xff]
    %v428 = vld [vmem:[#allocation2 + $0x198] sm:$0xff]
    %v429 = vld [vmem:[#allocation2 + $0x1a0] sm:$0xff]
    %v430 = vld [vmem:[#allocation2 + $0x1a8] sm:$0xff]
    %v431 = vld [vmem:[#allocation2 + $0x1b0] sm:$0xff]
    %v432 = vld [vmem:[#allocation2 + $0x1b8] sm:$0xff]
    %v433 = vld [vmem:[#allocation2 + $0x1c0] sm:$0xff]
    %v434 = vld [vmem:[#allocation2 + $0x1c8] sm:$0xff]
    %v435 = vld [vmem:[#allocation2 + $0x1d0] sm:$0xff]
    %v436 = vld [vmem:[#allocation2 + $0x1d8] sm:$0xff]
    %v437 = vld [vmem:[#allocation2 + $0x1e0] sm:$0xff]
    %v438 = vld [vmem:[#allocation2 + $0x1e8] sm:$0xff]
    %v439 = vld [vmem:[#allocation2 + $0x1f0] sm:$0xff]
    %v440 = vld [vmem:[#allocation2 + $0x1f8] sm:$0xff]
    %s441 = scalar_lea.vmem %s2, 2
    %v442 = vld [vmem:[%s441] ss:$8 sm:$0x3]
    %v444 = vlaneseq
    %v445 = vshrl.u32 %v444, 7
    %v446 = vsub.s32 0, %v445
    %v447 = vrot.slane %v442, %v446
    %v448 = vlaneseq
    %v449 = vshrl.u32 %v448, 7
    %v450 = vsub.s32 1, %v449
    %v451 = vrot.slane %v442, %v450
    %v470 = vunpack.c.l.b16 %v425
    %v471 = vunpack.c.h.b16 %v425
    %v472 = vunpack.c.l.b16 %v426
    %v473 = vunpack.c.h.b16 %v426
    %v474 = vunpack.c.l.b16 %v427
    %v475 = vunpack.c.h.b16 %v427
    %v476 = vunpack.c.l.b16 %v428
    %v477 = vunpack.c.h.b16 %v428
    %v478 = vunpack.c.l.b16 %v429
    %v479 = vunpack.c.h.b16 %v429
    %v480 = vunpack.c.l.b16 %v430
    %v481 = vunpack.c.h.b16 %v430
    %v482 = vunpack.c.l.b16 %v431
    %v483 = vunpack.c.h.b16 %v431
    %v484 = vunpack.c.l.b16 %v432
    %v485 = vunpack.c.h.b16 %v432
    %v486 = vunpack.c.l.b16 %v433
    %v487 = vunpack.c.h.b16 %v433
    %v488 = vunpack.c.l.b16 %v434
    %v489 = vunpack.c.h.b16 %v434
    %v490 = vunpack.c.l.b16 %v435
    %v491 = vunpack.c.h.b16 %v435
    %v492 = vunpack.c.l.b16 %v436
    %v493 = vunpack.c.h.b16 %v436
    %v494 = vunpack.c.l.b16 %v437
    %v495 = vunpack.c.h.b16 %v437
    %v496 = vunpack.c.l.b16 %v438
    %v497 = vunpack.c.h.b16 %v438
    %v498 = vunpack.c.l.b16 %v439
    %v499 = vunpack.c.h.b16 %v439
    %v500 = vunpack.c.l.b16 %v440
    %v501 = vunpack.c.h.b16 %v440
    %v502 = vpack.c.b16 %v472, %v470
    %v503 = vpack.c.b16 %v473, %v471
    %v504 = vpack.c.b16 %v476, %v474
    %v505 = vpack.c.b16 %v477, %v475
    %v506 = vpack.c.b16 %v480, %v478
    %v507 = vpack.c.b16 %v481, %v479
    %v508 = vpack.c.b16 %v484, %v482
    %v509 = vpack.c.b16 %v485, %v483
    %v510 = vpack.c.b16 %v488, %v486
    %v511 = vpack.c.b16 %v489, %v487
    %v512 = vpack.c.b16 %v492, %v490
    %v513 = vpack.c.b16 %v493, %v491
    %v514 = vpack.c.b16 %v496, %v494
    %v515 = vpack.c.b16 %v497, %v495
    %v516 = vpack.c.b16 %v500, %v498
    %v517 = vpack.c.b16 %v501, %v499
    %534 = vmatprep.subr.bf16.mxu0 %v503
    %535 = vmatpush1.bf16.msra.mxu0 %v502
    %536 = vmatprep.subr.bf16.mxu0 %v505
    %537 = vmatpush1.bf16.msra.mxu0 %v504
    %538 = vmatprep.subr.bf16.mxu0 %v507
    %539 = vmatpush1.bf16.msra.mxu0 %v506
    %540 = vmatprep.subr.bf16.mxu0 %v509
    %541 = vmatpush1.bf16.msra.mxu0 %v508
    %542 = vmatprep.subr.bf16.mxu0 %v511
    %543 = vmatpush1.bf16.msra.mxu0 %v510
    %544 = vmatprep.subr.bf16.mxu0 %v513
    %545 = vmatpush1.bf16.msra.mxu0 %v512
    %546 = vmatprep.subr.bf16.mxu0 %v515
    %547 = vmatpush1.bf16.msra.mxu0 %v514
    %548 = vmatprep.subr.bf16.mxu0 %v517
    %549 = vmatpush1.bf16.msra.mxu0 %v516
    %550 = vmatprep.subr.bf16.mxu0 0
    %551 = vmatpush1.bf16.msra.mxu0 0
    %552 = vmatprep.subr.bf16.mxu0 0
    %553 = vmatpush1.bf16.msra.mxu0 0
    %554 = vmatprep.subr.bf16.mxu0 0
    %555 = vmatpush1.bf16.msra.mxu0 0
    %556 = vmatprep.subr.bf16.mxu0 0
    %557 = vmatpush1.bf16.msra.mxu0 0
    %558 = vmatprep.subr.bf16.mxu0 0
    %559 = vmatpush1.bf16.msra.mxu0 0
    %560 = vmatprep.subr.bf16.mxu0 0
    %561 = vmatpush1.bf16.msra.mxu0 0
    %562 = vmatprep.subr.bf16.mxu0 0
    %563 = vmatpush1.bf16.msra.mxu0 0
    %564 = vmatprep.subr.bf16.mxu0 0
    %565 = vmatpush1.bf16.msra.mxu0 0
    %566 = vmatprep.mubr.bf16.mxu0 0
    %567 = vmatmul.mubr.bf16.gmra.mrb[0].mxu0 %v424
    %v568 = vpop.f32.mrb[0].mxu0
    %v569 = vadd.f32 %v447, %v568
    %v570 = vpop.f32.mrb[0].mxu0
    %v571 = vadd.f32 %v451, %v570
    %v572 = vpop.f32.mrb[0].mxu0
    %v573 = vpop.f32.mrb[0].mxu0
    %574 = vdwg.mxu0
    %v575 = vmax.f32 %v569, 0.0
    %v576 = vmax.f32 %v571, 0.0
    %v577 = vpack.c.bf16 %v575, %v575
    %v578 = vpack.c.bf16 %v576, %v576
    %v579 = vld [vmem:[#allocation2 + $0x200] sm:$0xff]
    %v580 = vld [vmem:[#allocation2 + $0x208] sm:$0xff]
    %v581 = vld [vmem:[#allocation2 + $0x210] sm:$0xff]
    %v582 = vld [vmem:[#allocation2 + $0x218] sm:$0xff]
    %v583 = vld [vmem:[#allocation2 + $0x220] sm:$0xff]
    %v584 = vld [vmem:[#allocation2 + $0x228] sm:$0xff]
    %v585 = vld [vmem:[#allocation2 + $0x230] sm:$0xff]
    %v586 = vld [vmem:[#allocation2 + $0x238] sm:$0xff]
    %v587 = vld [vmem:[#allocation2 + $0x240] sm:$0xff]
    %v588 = vld [vmem:[#allocation2 + $0x248] sm:$0xff]
    %v589 = vld [vmem:[#allocation2 + $0x250] sm:$0xff]
    %v590 = vld [vmem:[#allocation2 + $0x258] sm:$0xff]
    %v591 = vld [vmem:[#allocation2 + $0x260] sm:$0xff]
    %v592 = vld [vmem:[#allocation2 + $0x268] sm:$0xff]
    %v593 = vld [vmem:[#allocation2 + $0x270] sm:$0xff]
    %v594 = vld [vmem:[#allocation2 + $0x278] sm:$0xff]
    %v595 = vld [vmem:[#allocation2 + $0x280] sm:$0xff]
    %v596 = vld [vmem:[#allocation2 + $0x288] sm:$0xff]
    %v597 = vld [vmem:[#allocation2 + $0x290] sm:$0xff]
    %v598 = vld [vmem:[#allocation2 + $0x298] sm:$0xff]
    %v599 = vld [vmem:[#allocation2 + $0x2a0] sm:$0xff]
    %v600 = vld [vmem:[#allocation2 + $0x2a8] sm:$0xff]
    %v601 = vld [vmem:[#allocation2 + $0x2b0] sm:$0xff]
    %v602 = vld [vmem:[#allocation2 + $0x2b8] sm:$0xff]
    %v603 = vld [vmem:[#allocation2 + $0x2c0] sm:$0xff]
    %v604 = vld [vmem:[#allocation2 + $0x2c8] sm:$0xff]
    %v605 = vld [vmem:[#allocation2 + $0x2d0] sm:$0xff]
    %v606 = vld [vmem:[#allocation2 + $0x2d8] sm:$0xff]
    %v607 = vld [vmem:[#allocation2 + $0x2e0] sm:$0xff]
    %v608 = vld [vmem:[#allocation2 + $0x2e8] sm:$0xff]
    %v609 = vld [vmem:[#allocation2 + $0x2f0] sm:$0xff]
    %v610 = vld [vmem:[#allocation2 + $0x2f8] sm:$0xff]
    %s611 = scalar_lea.vmem %s2, 3
    %v612 = vld [vmem:[%s611] ss:$8 sm:$0x3]
    %v614 = vlaneseq
    %v615 = vshrl.u32 %v614, 7
    %v616 = vsub.s32 0, %v615
    %v617 = vrot.slane %v612, %v616
    %v651 = vunpack.c.l.b16 %v579
    %v652 = vunpack.c.h.b16 %v579
    %v653 = vunpack.c.l.b16 %v580
    %v654 = vunpack.c.h.b16 %v580
    %v655 = vunpack.c.l.b16 %v581
    %v656 = vunpack.c.h.b16 %v581
    %v657 = vunpack.c.l.b16 %v582
    %v658 = vunpack.c.h.b16 %v582
    %v659 = vunpack.c.l.b16 %v583
    %v660 = vunpack.c.h.b16 %v583
    %v661 = vunpack.c.l.b16 %v584
    %v662 = vunpack.c.h.b16 %v584
    %v663 = vunpack.c.l.b16 %v585
    %v664 = vunpack.c.h.b16 %v585
    %v665 = vunpack.c.l.b16 %v586
    %v666 = vunpack.c.h.b16 %v586
    %v667 = vunpack.c.l.b16 %v587
    %v668 = vunpack.c.h.b16 %v587
    %v669 = vunpack.c.l.b16 %v588
    %v670 = vunpack.c.h.b16 %v588
    %v671 = vunpack.c.l.b16 %v589
    %v672 = vunpack.c.h.b16 %v589
    %v673 = vunpack.c.l.b16 %v590
    %v674 = vunpack.c.h.b16 %v590
    %v675 = vunpack.c.l.b16 %v591
    %v676 = vunpack.c.h.b16 %v591
    %v677 = vunpack.c.l.b16 %v592
    %v678 = vunpack.c.h.b16 %v592
    %v679 = vunpack.c.l.b16 %v593
    %v680 = vunpack.c.h.b16 %v593
    %v681 = vunpack.c.l.b16 %v594
    %v682 = vunpack.c.h.b16 %v594
    %v683 = vunpack.c.l.b16 %v595
    %v684 = vunpack.c.h.b16 %v595
    %v685 = vunpack.c.l.b16 %v596
    %v686 = vunpack.c.h.b16 %v596
    %v687 = vunpack.c.l.b16 %v597
    %v688 = vunpack.c.h.b16 %v597
    %v689 = vunpack.c.l.b16 %v598
    %v690 = vunpack.c.h.b16 %v598
    %v691 = vunpack.c.l.b16 %v599
    %v692 = vunpack.c.h.b16 %v599
    %v693 = vunpack.c.l.b16 %v600
    %v694 = vunpack.c.h.b16 %v600
    %v695 = vunpack.c.l.b16 %v601
    %v696 = vunpack.c.h.b16 %v601
    %v697 = vunpack.c.l.b16 %v602
    %v698 = vunpack.c.h.b16 %v602
    %v699 = vunpack.c.l.b16 %v603
    %v700 = vunpack.c.h.b16 %v603
    %v701 = vunpack.c.l.b16 %v604
    %v702 = vunpack.c.h.b16 %v604
    %v703 = vunpack.c.l.b16 %v605
    %v704 = vunpack.c.h.b16 %v605
    %v705 = vunpack.c.l.b16 %v606
    %v706 = vunpack.c.h.b16 %v606
    %v707 = vunpack.c.l.b16 %v607
    %v708 = vunpack.c.h.b16 %v607
    %v709 = vunpack.c.l.b16 %v608
    %v710 = vunpack.c.h.b16 %v608
    %v711 = vunpack.c.l.b16 %v609
    %v712 = vunpack.c.h.b16 %v609
    %v713 = vunpack.c.l.b16 %v610
    %v714 = vunpack.c.h.b16 %v610
    %v715 = vpack.c.b16 %v653, %v651
    %v716 = vpack.c.b16 %v654, %v652
    %v717 = vpack.c.b16 %v657, %v655
    %v718 = vpack.c.b16 %v658, %v656
    %v719 = vpack.c.b16 %v661, %v659
    %v720 = vpack.c.b16 %v662, %v660
    %v721 = vpack.c.b16 %v665, %v663
    %v722 = vpack.c.b16 %v666, %v664
    %v723 = vpack.c.b16 %v669, %v667
    %v724 = vpack.c.b16 %v670, %v668
    %v725 = vpack.c.b16 %v673, %v671
    %v726 = vpack.c.b16 %v674, %v672
    %v727 = vpack.c.b16 %v677, %v675
    %v728 = vpack.c.b16 %v678, %v676
    %v729 = vpack.c.b16 %v681, %v679
    %v730 = vpack.c.b16 %v682, %v680
    %v731 = vpack.c.b16 %v685, %v683
    %v732 = vpack.c.b16 %v686, %v684
    %v733 = vpack.c.b16 %v689, %v687
    %v734 = vpack.c.b16 %v690, %v688
    %v735 = vpack.c.b16 %v693, %v691
    %v736 = vpack.c.b16 %v694, %v692
    %v737 = vpack.c.b16 %v697, %v695
    %v738 = vpack.c.b16 %v698, %v696
    %v739 = vpack.c.b16 %v701, %v699
    %v740 = vpack.c.b16 %v702, %v700
    %v741 = vpack.c.b16 %v705, %v703
    %v742 = vpack.c.b16 %v706, %v704
    %v743 = vpack.c.b16 %v709, %v707
    %v744 = vpack.c.b16 %v710, %v708
    %v745 = vpack.c.b16 %v713, %v711
    %v746 = vpack.c.b16 %v714, %v712
    %779 = vmatprep.subr.bf16.mxu0 %v716
    %780 = vmatpush1.bf16.msra.mxu0 %v715
    %781 = vmatprep.subr.bf16.mxu0 %v718
    %782 = vmatpush1.bf16.msra.mxu0 %v717
    %783 = vmatprep.subr.bf16.mxu0 %v720
    %784 = vmatpush1.bf16.msra.mxu0 %v719
    %785 = vmatprep.subr.bf16.mxu0 %v722
    %786 = vmatpush1.bf16.msra.mxu0 %v721
    %787 = vmatprep.subr.bf16.mxu0 %v724
    %788 = vmatpush1.bf16.msra.mxu0 %v723
    %789 = vmatprep.subr.bf16.mxu0 %v726
    %790 = vmatpush1.bf16.msra.mxu0 %v725
    %791 = vmatprep.subr.bf16.mxu0 %v728
    %792 = vmatpush1.bf16.msra.mxu0 %v727
    %793 = vmatprep.subr.bf16.mxu0 %v730
    %794 = vmatpush1.bf16.msra.mxu0 %v729
    %795 = vmatprep.subr.bf16.mxu0 %v732
    %796 = vmatpush1.bf16.msra.mxu0 %v731
    %797 = vmatprep.subr.bf16.mxu0 %v734
    %798 = vmatpush1.bf16.msra.mxu0 %v733
    %799 = vmatprep.subr.bf16.mxu0 %v736
    %800 = vmatpush1.bf16.msra.mxu0 %v735
    %801 = vmatprep.subr.bf16.mxu0 %v738
    %802 = vmatpush1.bf16.msra.mxu0 %v737
    %803 = vmatprep.subr.bf16.mxu0 %v740
    %804 = vmatpush1.bf16.msra.mxu0 %v739
    %805 = vmatprep.subr.bf16.mxu0 %v742
    %806 = vmatpush1.bf16.msra.mxu0 %v741
    %807 = vmatprep.subr.bf16.mxu0 %v744
    %808 = vmatpush1.bf16.msra.mxu0 %v743
    %809 = vmatprep.subr.bf16.mxu0 %v746
    %810 = vmatpush1.bf16.msra.mxu0 %v745
    %811 = vmatprep.mubr.bf16.mxu0 %v578
    %812 = vmatmul.mubr.bf16.gmra.mrb[0].mxu0 %v577
    %v813 = vpop.f32.mrb[0].mxu0
    %v814 = vadd.f32 %v617, %v813
    %v815 = vpop.f32.mrb[0].mxu0
    %v816 = vpop.f32.mrb[0].mxu0
    %v817 = vpop.f32.mrb[0].mxu0
    %818 = vdwg.mxu0
    %v819 = vmax.f32 %v814, 0.0
    %v820 = vpack.c.bf16 %v819, %v819
    %v821 = vld [vmem:[#allocation2 + $0x300] sm:$0xff]
    %v822 = vld [vmem:[#allocation2 + $0x308] sm:$0xff]
    %v823 = vld [vmem:[#allocation2 + $0x310] sm:$0xff]
    %v824 = vld [vmem:[#allocation2 + $0x318] sm:$0xff]
    %v825 = vld [vmem:[#allocation2 + $0x320] sm:$0xff]
    %v826 = vld [vmem:[#allocation2 + $0x328] sm:$0xff]
    %v827 = vld [vmem:[#allocation2 + $0x330] sm:$0xff]
    %v828 = vld [vmem:[#allocation2 + $0x338] sm:$0xff]
    %v829 = vld [vmem:[#allocation2 + $0x340] sm:$0xff]
    %v830 = vld [vmem:[#allocation2 + $0x348] sm:$0xff]
    %v831 = vld [vmem:[#allocation2 + $0x350] sm:$0xff]
    %v832 = vld [vmem:[#allocation2 + $0x358] sm:$0xff]
    %v833 = vld [vmem:[#allocation2 + $0x360] sm:$0xff]
    %v834 = vld [vmem:[#allocation2 + $0x368] sm:$0xff]
    %v835 = vld [vmem:[#allocation2 + $0x370] sm:$0xff]
    %v836 = vld [vmem:[#allocation2 + $0x378] sm:$0xff]
    %s837 = scalar_lea.vmem %s2, 4
    %v838 = vld [vmem:[%s837] ss:$8 sm:$0x3]
    %v840 = vlaneseq
    %v841 = vshrl.u32 %v840, 7
    %v842 = vsub.s32 0, %v841
    %v843 = vrot.slane %v838, %v842
    %v844 = vlaneseq
    %v845 = vshrl.u32 %v844, 7
    %v846 = vsub.s32 1, %v845
    %v847 = vrot.slane %v838, %v846
    %v866 = vunpack.c.l.b16 %v821
    %v867 = vunpack.c.h.b16 %v821
    %v868 = vunpack.c.l.b16 %v822
    %v869 = vunpack.c.h.b16 %v822
    %v870 = vunpack.c.l.b16 %v823
    %v871 = vunpack.c.h.b16 %v823
    %v872 = vunpack.c.l.b16 %v824
    %v873 = vunpack.c.h.b16 %v824
    %v874 = vunpack.c.l.b16 %v825
    %v875 = vunpack.c.h.b16 %v825
    %v876 = vunpack.c.l.b16 %v826
    %v877 = vunpack.c.h.b16 %v826
    %v878 = vunpack.c.l.b16 %v827
    %v879 = vunpack.c.h.b16 %v827
    %v880 = vunpack.c.l.b16 %v828
    %v881 = vunpack.c.h.b16 %v828
    %v882 = vunpack.c.l.b16 %v829
    %v883 = vunpack.c.h.b16 %v829
    %v884 = vunpack.c.l.b16 %v830
    %v885 = vunpack.c.h.b16 %v830
    %v886 = vunpack.c.l.b16 %v831
    %v887 = vunpack.c.h.b16 %v831
    %v888 = vunpack.c.l.b16 %v832
    %v889 = vunpack.c.h.b16 %v832
    %v890 = vunpack.c.l.b16 %v833
    %v891 = vunpack.c.h.b16 %v833
    %v892 = vunpack.c.l.b16 %v834
    %v893 = vunpack.c.h.b16 %v834
    %v894 = vunpack.c.l.b16 %v835
    %v895 = vunpack.c.h.b16 %v835
    %v896 = vunpack.c.l.b16 %v836
    %v897 = vunpack.c.h.b16 %v836
    %v898 = vpack.c.b16 %v868, %v866
    %v899 = vpack.c.b16 %v869, %v867
    %v900 = vpack.c.b16 %v872, %v870
    %v901 = vpack.c.b16 %v873, %v871
    %v902 = vpack.c.b16 %v876, %v874
    %v903 = vpack.c.b16 %v877, %v875
    %v904 = vpack.c.b16 %v880, %v878
    %v905 = vpack.c.b16 %v881, %v879
    %v906 = vpack.c.b16 %v884, %v882
    %v907 = vpack.c.b16 %v885, %v883
    %v908 = vpack.c.b16 %v888, %v886
    %v909 = vpack.c.b16 %v889, %v887
    %v910 = vpack.c.b16 %v892, %v890
    %v911 = vpack.c.b16 %v893, %v891
    %v912 = vpack.c.b16 %v896, %v894
    %v913 = vpack.c.b16 %v897, %v895
    %930 = vmatprep.subr.bf16.mxu0 %v899
    %931 = vmatpush1.bf16.msra.mxu0 %v898
    %932 = vmatprep.subr.bf16.mxu0 %v901
    %933 = vmatpush1.bf16.msra.mxu0 %v900
    %934 = vmatprep.subr.bf16.mxu0 %v903
    %935 = vmatpush1.bf16.msra.mxu0 %v902
    %936 = vmatprep.subr.bf16.mxu0 %v905
    %937 = vmatpush1.bf16.msra.mxu0 %v904
    %938 = vmatprep.subr.bf16.mxu0 %v907
    %939 = vmatpush1.bf16.msra.mxu0 %v906
    %940 = vmatprep.subr.bf16.mxu0 %v909
    %941 = vmatpush1.bf16.msra.mxu0 %v908
    %942 = vmatprep.subr.bf16.mxu0 %v911
    %943 = vmatpush1.bf16.msra.mxu0 %v910
    %944 = vmatprep.subr.bf16.mxu0 %v913
    %945 = vmatpush1.bf16.msra.mxu0 %v912
    %946 = vmatprep.subr.bf16.mxu0 0
    %947 = vmatpush1.bf16.msra.mxu0 0
    %948 = vmatprep.subr.bf16.mxu0 0
    %949 = vmatpush1.bf16.msra.mxu0 0
    %950 = vmatprep.subr.bf16.mxu0 0
    %951 = vmatpush1.bf16.msra.mxu0 0
    %952 = vmatprep.subr.bf16.mxu0 0
    %953 = vmatpush1.bf16.msra.mxu0 0
    %954 = vmatprep.subr.bf16.mxu0 0
    %955 = vmatpush1.bf16.msra.mxu0 0
    %956 = vmatprep.subr.bf16.mxu0 0
    %957 = vmatpush1.bf16.msra.mxu0 0
    %958 = vmatprep.subr.bf16.mxu0 0
    %959 = vmatpush1.bf16.msra.mxu0 0
    %960 = vmatprep.subr.bf16.mxu0 0
    %961 = vmatpush1.bf16.msra.mxu0 0
    %962 = vmatprep.mubr.bf16.mxu0 0
    %963 = vmatmul.mubr.bf16.gmra.mrb[0].mxu0 %v820
    %v964 = vpop.f32.mrb[0].mxu0
    %v965 = vadd.f32 %v843, %v964
    %v966 = vpop.f32.mrb[0].mxu0
    %v967 = vadd.f32 %v847, %v966
    %v968 = vpop.f32.mrb[0].mxu0
    %v969 = vpop.f32.mrb[0].mxu0
    %970 = vdwg.mxu0
    %v971 = vmax.f32 %v965, 0.0
    %v972 = vmax.f32 %v967, 0.0
    %v973 = vpack.c.bf16 %v971, %v971
    %v974 = vpack.c.bf16 %v972, %v972
    %v975 = vld [vmem:[#allocation2 + $0x380] sm:$0xff]
    %v976 = vld [vmem:[#allocation2 + $0x388] sm:$0xff]
    %v977 = vld [vmem:[#allocation2 + $0x390] sm:$0xff]
    %v978 = vld [vmem:[#allocation2 + $0x398] sm:$0xff]
    %v979 = vld [vmem:[#allocation2 + $0x3a0] sm:$0xff]
    %v980 = vld [vmem:[#allocation2 + $0x3a8] sm:$0xff]
    %v981 = vld [vmem:[#allocation2 + $0x3b0] sm:$0xff]
    %v982 = vld [vmem:[#allocation2 + $0x3b8] sm:$0xff]
    %v983 = vld [vmem:[#allocation2 + $0x3c0] sm:$0xff]
    %v984 = vld [vmem:[#allocation2 + $0x3c8] sm:$0xff]
    %v985 = vld [vmem:[#allocation2 + $0x3d0] sm:$0xff]
    %v986 = vld [vmem:[#allocation2 + $0x3d8] sm:$0xff]
    %v987 = vld [vmem:[#allocation2 + $0x3e0] sm:$0xff]
    %v988 = vld [vmem:[#allocation2 + $0x3e8] sm:$0xff]
    %v989 = vld [vmem:[#allocation2 + $0x3f0] sm:$0xff]
    %v990 = vld [vmem:[#allocation2 + $0x3f8] sm:$0xff]
    %v991 = vld [vmem:[#allocation2 + $0x400] sm:$0xff]
    %v992 = vld [vmem:[#allocation2 + $0x408] sm:$0xff]
    %v993 = vld [vmem:[#allocation2 + $0x410] sm:$0xff]
    %v994 = vld [vmem:[#allocation2 + $0x418] sm:$0xff]
    %v995 = vld [vmem:[#allocation2 + $0x420] sm:$0xff]
    %v996 = vld [vmem:[#allocation2 + $0x428] sm:$0xff]
    %v997 = vld [vmem:[#allocation2 + $0x430] sm:$0xff]
    %v998 = vld [vmem:[#allocation2 + $0x438] sm:$0xff]
    %v999 = vld [vmem:[#allocation2 + $0x440] sm:$0xff]
    %v1000 = vld [vmem:[#allocation2 + $0x448] sm:$0xff]
    %v1001 = vld [vmem:[#allocation2 + $0x450] sm:$0xff]
    %v1002 = vld [vmem:[#allocation2 + $0x458] sm:$0xff]
    %v1003 = vld [vmem:[#allocation2 + $0x460] sm:$0xff]
    %v1004 = vld [vmem:[#allocation2 + $0x468] sm:$0xff]
    %v1005 = vld [vmem:[#allocation2 + $0x470] sm:$0xff]
    %v1006 = vld [vmem:[#allocation2 + $0x478] sm:$0xff]
    %s1007 = scalar_lea.vmem %s2, 5
    %v1008 = vld [vmem:[%s1007] ss:$8 sm:$0x3]
    %v1010 = vlaneseq
    %v1011 = vshrl.u32 %v1010, 7
    %v1012 = vsub.s32 0, %v1011
    %v1013 = vrot.slane %v1008, %v1012
    %v1014 = vlaneseq
    %v1015 = vshrl.u32 %v1014, 7
    %v1016 = vsub.s32 1, %v1015
    %v1017 = vrot.slane %v1008, %v1016
    %v1052 = vunpack.c.l.b16 %v975
    %v1053 = vunpack.c.h.b16 %v975
    %v1054 = vunpack.c.l.b16 %v976
    %v1055 = vunpack.c.h.b16 %v976
    %v1056 = vunpack.c.l.b16 %v977
    %v1057 = vunpack.c.h.b16 %v977
    %v1058 = vunpack.c.l.b16 %v978
    %v1059 = vunpack.c.h.b16 %v978
    %v1060 = vunpack.c.l.b16 %v979
    %v1061 = vunpack.c.h.b16 %v979
    %v1062 = vunpack.c.l.b16 %v980
    %v1063 = vunpack.c.h.b16 %v980
    %v1064 = vunpack.c.l.b16 %v981
    %v1065 = vunpack.c.h.b16 %v981
    %v1066 = vunpack.c.l.b16 %v982
    %v1067 = vunpack.c.h.b16 %v982
    %v1068 = vunpack.c.l.b16 %v983
    %v1069 = vunpack.c.h.b16 %v983
    %v1070 = vunpack.c.l.b16 %v984
    %v1071 = vunpack.c.h.b16 %v984
    %v1072 = vunpack.c.l.b16 %v985
    %v1073 = vunpack.c.h.b16 %v985
    %v1074 = vunpack.c.l.b16 %v986
    %v1075 = vunpack.c.h.b16 %v986
    %v1076 = vunpack.c.l.b16 %v987
    %v1077 = vunpack.c.h.b16 %v987
    %v1078 = vunpack.c.l.b16 %v988
    %v1079 = vunpack.c.h.b16 %v988
    %v1080 = vunpack.c.l.b16 %v989
    %v1081 = vunpack.c.h.b16 %v989
    %v1082 = vunpack.c.l.b16 %v990
    %v1083 = vunpack.c.h.b16 %v990
    %v1084 = vunpack.c.l.b16 %v991
    %v1085 = vunpack.c.h.b16 %v991
    %v1086 = vunpack.c.l.b16 %v992
    %v1087 = vunpack.c.h.b16 %v992
    %v1088 = vunpack.c.l.b16 %v993
    %v1089 = vunpack.c.h.b16 %v993
    %v1090 = vunpack.c.l.b16 %v994
    %v1091 = vunpack.c.h.b16 %v994
    %v1092 = vunpack.c.l.b16 %v995
    %v1093 = vunpack.c.h.b16 %v995
    %v1094 = vunpack.c.l.b16 %v996
    %v1095 = vunpack.c.h.b16 %v996
    %v1096 = vunpack.c.l.b16 %v997
    %v1097 = vunpack.c.h.b16 %v997
    %v1098 = vunpack.c.l.b16 %v998
    %v1099 = vunpack.c.h.b16 %v998
    %v1100 = vunpack.c.l.b16 %v999
    %v1101 = vunpack.c.h.b16 %v999
    %v1102 = vunpack.c.l.b16 %v1000
    %v1103 = vunpack.c.h.b16 %v1000
    %v1104 = vunpack.c.l.b16 %v1001
    %v1105 = vunpack.c.h.b16 %v1001
    %v1106 = vunpack.c.l.b16 %v1002
    %v1107 = vunpack.c.h.b16 %v1002
    %v1108 = vunpack.c.l.b16 %v1003
    %v1109 = vunpack.c.h.b16 %v1003
    %v1110 = vunpack.c.l.b16 %v1004
    %v1111 = vunpack.c.h.b16 %v1004
    %v1112 = vunpack.c.l.b16 %v1005
    %v1113 = vunpack.c.h.b16 %v1005
    %v1114 = vunpack.c.l.b16 %v1006
    %v1115 = vunpack.c.h.b16 %v1006
    %v1116 = vpack.c.b16 %v1054, %v1052
    %v1117 = vpack.c.b16 %v1055, %v1053
    %v1118 = vpack.c.b16 %v1058, %v1056
    %v1119 = vpack.c.b16 %v1059, %v1057
    %v1120 = vpack.c.b16 %v1062, %v1060
    %v1121 = vpack.c.b16 %v1063, %v1061
    %v1122 = vpack.c.b16 %v1066, %v1064
    %v1123 = vpack.c.b16 %v1067, %v1065
    %v1124 = vpack.c.b16 %v1070, %v1068
    %v1125 = vpack.c.b16 %v1071, %v1069
    %v1126 = vpack.c.b16 %v1074, %v1072
    %v1127 = vpack.c.b16 %v1075, %v1073
    %v1128 = vpack.c.b16 %v1078, %v1076
    %v1129 = vpack.c.b16 %v1079, %v1077
    %v1130 = vpack.c.b16 %v1082, %v1080
    %v1131 = vpack.c.b16 %v1083, %v1081
    %v1132 = vpack.c.b16 %v1086, %v1084
    %v1133 = vpack.c.b16 %v1087, %v1085
    %v1134 = vpack.c.b16 %v1090, %v1088
    %v1135 = vpack.c.b16 %v1091, %v1089
    %v1136 = vpack.c.b16 %v1094, %v1092
    %v1137 = vpack.c.b16 %v1095, %v1093
    %v1138 = vpack.c.b16 %v1098, %v1096
    %v1139 = vpack.c.b16 %v1099, %v1097
    %v1140 = vpack.c.b16 %v1102, %v1100
    %v1141 = vpack.c.b16 %v1103, %v1101
    %v1142 = vpack.c.b16 %v1106, %v1104
    %v1143 = vpack.c.b16 %v1107, %v1105
    %v1144 = vpack.c.b16 %v1110, %v1108
    %v1145 = vpack.c.b16 %v1111, %v1109
    %v1146 = vpack.c.b16 %v1114, %v1112
    %v1147 = vpack.c.b16 %v1115, %v1113
    %1180 = vmatprep.subr.bf16.mxu0 %v1117
    %1181 = vmatpush1.bf16.msra.mxu0 %v1116
    %1182 = vmatprep.subr.bf16.mxu0 %v1119
    %1183 = vmatpush1.bf16.msra.mxu0 %v1118
    %1184 = vmatprep.subr.bf16.mxu0 %v1121
    %1185 = vmatpush1.bf16.msra.mxu0 %v1120
    %1186 = vmatprep.subr.bf16.mxu0 %v1123
    %1187 = vmatpush1.bf16.msra.mxu0 %v1122
    %1188 = vmatprep.subr.bf16.mxu0 %v1125
    %1189 = vmatpush1.bf16.msra.mxu0 %v1124
    %1190 = vmatprep.subr.bf16.mxu0 %v1127
    %1191 = vmatpush1.bf16.msra.mxu0 %v1126
    %1192 = vmatprep.subr.bf16.mxu0 %v1129
    %1193 = vmatpush1.bf16.msra.mxu0 %v1128
    %1194 = vmatprep.subr.bf16.mxu0 %v1131
    %1195 = vmatpush1.bf16.msra.mxu0 %v1130
    %1196 = vmatprep.subr.bf16.mxu0 %v1133
    %1197 = vmatpush1.bf16.msra.mxu0 %v1132
    %1198 = vmatprep.subr.bf16.mxu0 %v1135
    %1199 = vmatpush1.bf16.msra.mxu0 %v1134
    %1200 = vmatprep.subr.bf16.mxu0 %v1137
    %1201 = vmatpush1.bf16.msra.mxu0 %v1136
    %1202 = vmatprep.subr.bf16.mxu0 %v1139
    %1203 = vmatpush1.bf16.msra.mxu0 %v1138
    %1204 = vmatprep.subr.bf16.mxu0 %v1141
    %1205 = vmatpush1.bf16.msra.mxu0 %v1140
    %1206 = vmatprep.subr.bf16.mxu0 %v1143
    %1207 = vmatpush1.bf16.msra.mxu0 %v1142
    %1208 = vmatprep.subr.bf16.mxu0 %v1145
    %1209 = vmatpush1.bf16.msra.mxu0 %v1144
    %1210 = vmatprep.subr.bf16.mxu0 %v1147
    %1211 = vmatpush1.bf16.msra.mxu0 %v1146
    %1212 = vmatprep.mubr.bf16.mxu0 %v974
    %1213 = vmatmul.mubr.bf16.gmra.mrb[0].mxu0 %v973
    %v1214 = vpop.f32.mrb[0].mxu0
    %v1215 = vadd.f32 %v1013, %v1214
    %v1216 = vpop.f32.mrb[0].mxu0
    %v1217 = vadd.f32 %v1017, %v1216
    %v1218 = vpop.f32.mrb[0].mxu0
    %v1219 = vpop.f32.mrb[0].mxu0
    %1220 = vdwg.mxu0
    %v1223 = vcombine.low %v1215, %v1217
    %v1225 = vunpack.c.l.s4 1983009808
    %v1226 = vunpack.c.0.s8 %v1225
    %v1227 = vlaneseq
    %v1228 = vshrl.u32 %v1227, 7
    %v1229 = vsub.s32 %v1226, %v1228
    %v1230 = vrot.slane %v1223, %v1229
    %1232 = vst [vmem:[%s3] sm:$0xf] %v1230
    // Predicated region
    $region18: #{bandnet_forward.1} parent=1 // pred_check
      _
    $region19: #{bandnet_forward.1} parent=1 // pred_check_branch
      %1234 = sbr.rel (0) target = $region21
    $region20: #{bandnet_forward.1} parent=1 // pred_region
      _
    $region21: #{bandnet_forward.1} parent=1 // pred_fallthru
      _
    // Predicated region
    $region22: #{bandnet_forward.1} parent=1 // pred_check
      _
    $region23: #{bandnet_forward.1} parent=1 // pred_check_branch
      %1236 = sbr.rel (0) target = $region25
    $region24: #{bandnet_forward.1} parent=1 // pred_region
      _
    $region25: #{bandnet_forward.1} parent=1 // pred_fallthru
      _
    %1237 = vsyncpa [#allocation3], 1

</llo_original>
